<compile_context>
chip_gen: v7x
topology: tpu7x:2x2x1
jax: 0.10.0
libtpu: 0.0.40
codegen_flags: <defaults>
</compile_context>

<pallas_src>
import math
import functools

import jax
import jax.numpy as jnp
from jax import lax
from jax.experimental import pallas as pl
from jax.experimental.pallas import tpu as pltpu


def _round_up(v, m):
    return ((v + m - 1) // m) * m


def noisy_linear_kernel(x_ref, mu_w_ref, sig_w_ref, eps_w_ref, b_ref,
                        o_ref, acc_ref):
    k = pl.program_id(1)

    @pl.when(k == 0)
    def _():
        acc_ref[...] = jnp.zeros_like(acc_ref)

    # Noisy-weight construction on the VPU for this (tn, tk) tile.
    w = mu_w_ref[...] + sig_w_ref[...] * eps_w_ref[...]          # (tn, tk)

    # x (B, tk) . w (tn, tk) contracting the K dims -> (B, tn); no transpose.
    acc_ref[...] += lax.dot_general(
        x_ref[...], w,
        dimension_numbers=(((1,), (1,)), ((), ())),
        preferred_element_type=jnp.float32)

    @pl.when(k == pl.num_programs(1) - 1)
    def _():
        o_ref[...] = (acc_ref[...] + b_ref[...]).astype(o_ref.dtype)


@functools.partial(jax.jit, static_argnames=("tn", "tk"))
def noisy_linear_forward(x, mu_w, sig_w, eps_w, mu_b, sig_b, eps_b,
                         *, tn=512, tk=512):
    """x: (batch, num_in); weights: (num_out, num_in); returns (batch, num_out)."""
    batch, num_in = x.shape
    num_out = mu_w.shape[0]

    # Lane-dense / sublane-aligned padding.
    kp = _round_up(num_in, 128)
    np_ = _round_up(num_out, 128)
    tk_ = min(tk, kp)
    tn_ = min(tn, np_)
    kp = _round_up(kp, tk_)
    np_ = _round_up(np_, tn_)
    bp = _round_up(batch, 8)

    x_p = jnp.pad(x, ((0, bp - batch), (0, kp - num_in)))
    pad_w = ((0, np_ - num_out), (0, kp - num_in))
    mu_w_p = jnp.pad(mu_w, pad_w)
    sig_w_p = jnp.pad(sig_w, pad_w)
    eps_w_p = jnp.pad(eps_w, pad_w)

    # Precompute the noisy bias once (tiny) and keep it as a single (1, N) row.
    b = (mu_b + sig_b * eps_b).astype(jnp.float32)
    b_p = jnp.pad(b, (0, np_ - num_out)).reshape(1, np_)

    grid = (np_ // tn_, kp // tk_)

    cost = pl.CostEstimate(
        flops=2 * batch * num_in * num_out + 2 * num_out * num_in,
        transcendentals=0,
        bytes_accessed=(3 * num_out * num_in + batch * num_in
                        + batch * num_out + num_out) * 4,
    )

    out_p = pl.pallas_call(
        noisy_linear_kernel,
        out_shape=jax.ShapeDtypeStruct((bp, np_), jnp.float32),
        grid_spec=pltpu.PrefetchScalarGridSpec(
            num_scalar_prefetch=0,
            grid=grid,
            in_specs=[
                pl.BlockSpec((bp, tk_), lambda n, k: (0, k)),    # x
                pl.BlockSpec((tn_, tk_), lambda n, k: (n, k)),   # mu_w
                pl.BlockSpec((tn_, tk_), lambda n, k: (n, k)),   # sigma_w
                pl.BlockSpec((tn_, tk_), lambda n, k: (n, k)),   # eps_w
                pl.BlockSpec((1, tn_), lambda n, k: (0, n)),     # noisy bias
            ],
            out_specs=pl.BlockSpec((bp, tn_), lambda n, k: (0, n)),
            scratch_shapes=[pltpu.VMEM((bp, tn_), jnp.float32)],
        ),
        compiler_params=pltpu.CompilerParams(
            dimension_semantics=("parallel", "arbitrary")),
        cost_estimate=cost,
    )(x_p, mu_w_p, sig_w_p, eps_w_p, b_p)

    return out_p[:batch, :num_out]


class NoisyLinearJax:
    """Deterministic JAX re-implementation of the PyTorch NoisyLinear module."""

    def __init__(self, num_in, num_out, key, is_training=True):
        self.num_in = num_in
        self.num_out = num_out
        self.is_training = is_training
        k_w, k_b, self._noise_key = jax.random.split(key, 3)
        std = math.sqrt(3.0 / num_in)
        # reset_parameters()
        self.mu_weight = jax.random.uniform(
            k_w, (num_out, num_in), jnp.float32, minval=-std, maxval=std)
        self.mu_bias = jax.random.uniform(
            k_b, (num_out,), jnp.float32, minval=-std, maxval=std)
        self.sigma_weight = jnp.full((num_out, num_in), 0.017, jnp.float32)
        self.sigma_bias = jnp.full((num_out,), 0.017, jnp.float32)
        self.epsilon_weight = jnp.zeros((num_out, num_in), jnp.float32)
        self.epsilon_bias = jnp.zeros((num_out,), jnp.float32)
        self.reset_noise()

    def reset_noise(self):
        self._noise_key, k_w, k_b = jax.random.split(self._noise_key, 3)
        self.epsilon_weight = jax.random.normal(
            k_w, (self.num_out, self.num_in), jnp.float32)
        self.epsilon_bias = jax.random.normal(k_b, (self.num_out,), jnp.float32)

    def forward(self, x, *, tn=512, tk=512):
        self.reset_noise()
        if self.is_training:
            eps_w, eps_b = self.epsilon_weight, self.epsilon_bias
        else:
            # TODO(synk): eval branch in the original has a typo (`buas`) and
            # uses an undefined `bias`; we model eval as zero-noise instead.
            eps_w = jnp.zeros_like(self.epsilon_weight)
            eps_b = jnp.zeros_like(self.epsilon_bias)
        return noisy_linear_forward(
            x, self.mu_weight, self.sigma_weight, eps_w,
            self.mu_bias, self.sigma_bias, eps_b, tn=tn, tk=tk)


if __name__ == "__main__":
    key = jax.random.PRNGKey(0)
    k_mod, k_x = jax.random.split(key)

    # Small shapes, but sized so the (N, K) grid has multiple steps
    # (256/128 = 2 tiles on each axis) to exercise the accumulator path.
    batch, num_in, num_out = 8, 256, 256
    layer = NoisyLinearJax(num_in, num_out, k_mod, is_training=True)
    x = jax.random.normal(k_x, (batch, num_in), jnp.float32)

    y = layer.forward(x, tn=128, tk=128)
    y = jax.block_until_ready(y)

    # Pure-JAX reference with the same sampled noise (reset_noise already ran
    # inside forward; epsilon_* now hold the noise used by the kernel).
    w_ref = layer.mu_weight + layer.sigma_weight * layer.epsilon_weight
    b_ref = layer.mu_bias + layer.sigma_bias * layer.epsilon_bias
    y_ref = x @ w_ref.T + b_ref

    assert y.shape == (batch, num_out)
    assert jnp.allclose(y, y_ref, atol=1e-4, rtol=1e-4)
    print("KERNEL_OK")
</pallas_src>

<mosaic_0001>
module attributes {stable_mosaic.version = 11 : i64} {
  func.func @noisy_linear_kernel(%arg0: i32, %arg1: i32, %arg2: memref<8x128xf32, #tpu.memory_space<vmem>>, %arg3: memref<128x128xf32, #tpu.memory_space<vmem>>, %arg4: memref<128x128xf32, #tpu.memory_space<vmem>>, %arg5: memref<128x128xf32, #tpu.memory_space<vmem>>, %arg6: memref<1x128xf32, #tpu.memory_space<vmem>>, %arg7: memref<8x128xf32, #tpu.memory_space<vmem>>, %arg8: memref<8x128xf32, #tpu.memory_space<vmem>>) attributes {dimension_semantics = [#tpu.dimension_semantics<parallel>, #tpu.dimension_semantics<arbitrary>], iteration_bounds = array<i64: 2, 2>, scalar_prefetch = 0 : i64, scratch_operands = 1 : i64, tpu.core_type = #tpu.core_type<tc>, window_params = [{transform_indices = @transform_0, window_bounds = array<i64: 8, 128>}, {transform_indices = @transform_1, window_bounds = array<i64: 128, 128>}, {transform_indices = @transform_2, window_bounds = array<i64: 128, 128>}, {transform_indices = @transform_3, window_bounds = array<i64: 128, 128>}, {transform_indices = @transform_4, window_bounds = array<i64: 1, 128>}, {transform_indices = @transform_5, window_bounds = array<i64: 8, 128>}]} {
    %c0_i32 = arith.constant 0 : i32
    %0 = arith.cmpi eq, %arg1, %c0_i32 : i32
    %1 = arith.extui %0 : i1 to i32
    %c0_i32_0 = arith.constant 0 : i32
    %2 = arith.cmpi ne, %1, %c0_i32_0 : i32
    scf.if %2 {
      %cst_13 = arith.constant 0.000000e+00 : f32
      %16 = vector.broadcast %cst_13 : f32 to vector<8x128xf32>
      %c0_14 = arith.constant 0 : index
      %c0_15 = arith.constant 0 : index
      %17 = vector.load %arg8[%c0_14, %c0_15] : memref<8x128xf32, #tpu.memory_space<vmem>>, vector<8x128xf32>
      tpu.vector_store %arg8[%c0_14, %c0_15], %16 {strides = array<i32>} : memref<8x128xf32, #tpu.memory_space<vmem>>, vector<8x128xf32>,
    } else {
    }
    %c0 = arith.constant 0 : index
    %c0_1 = arith.constant 0 : index
    %3 = vector.load %arg3[%c0, %c0_1] : memref<128x128xf32, #tpu.memory_space<vmem>>, vector<128x128xf32>
    %c0_2 = arith.constant 0 : index
    %c0_3 = arith.constant 0 : index
    %4 = vector.load %arg4[%c0_2, %c0_3] : memref<128x128xf32, #tpu.memory_space<vmem>>, vector<128x128xf32>
    %c0_4 = arith.constant 0 : index
    %c0_5 = arith.constant 0 : index
    %5 = vector.load %arg5[%c0_4, %c0_5] : memref<128x128xf32, #tpu.memory_space<vmem>>, vector<128x128xf32>
    %6 = arith.mulf %4, %5 : vector<128x128xf32>
    %7 = arith.addf %3, %6 : vector<128x128xf32>
    %c0_6 = arith.constant 0 : index
    %c0_7 = arith.constant 0 : index
    %8 = vector.load %arg8[%c0_6, %c0_7] : memref<8x128xf32, #tpu.memory_space<vmem>>, vector<8x128xf32>
    %c0_8 = arith.constant 0 : index
    %c0_9 = arith.constant 0 : index
    %9 = vector.load %arg2[%c0_8, %c0_9] : memref<8x128xf32, #tpu.memory_space<vmem>>, vector<8x128xf32>
    %cst = arith.constant dense<0.000000e+00> : vector<8x128xf32>
    %10 = tpu.matmul %9, %7, %cst {dimension_numbers = #tpu.dot_dimension_numbers<[1], [1], [0], [0], [0, 0, 1, 0], [], []>} : vector<8x128xf32>, vector<128x128xf32>, vector<8x128xf32> -> vector<8x128xf32>
    %11 = arith.addf %8, %10 : vector<8x128xf32>
    %c0_10 = arith.constant 0 : index
    %c0_11 = arith.constant 0 : index
    %12 = vector.load %arg8[%c0_10, %c0_11] : memref<8x128xf32, #tpu.memory_space<vmem>>, vector<8x128xf32>
    tpu.vector_store %arg8[%c0_10, %c0_11], %11 {strides = array<i32>} : memref<8x128xf32, #tpu.memory_space<vmem>>, vector<8x128xf32>,
    %c1_i32 = arith.constant 1 : i32
    %13 = arith.cmpi eq, %arg1, %c1_i32 : i32
    %14 = arith.extui %13 : i1 to i32
    %c0_i32_12 = arith.constant 0 : i32
    %15 = arith.cmpi ne, %14, %c0_i32_12 : i32
    scf.if %15 {
      %c0_13 = arith.constant 0 : index
      %c0_14 = arith.constant 0 : index
      %16 = vector.load %arg8[%c0_13, %c0_14] : memref<8x128xf32, #tpu.memory_space<vmem>>, vector<8x128xf32>
      %c0_15 = arith.constant 0 : index
      %c0_16 = arith.constant 0 : index
      %17 = vector.load %arg6[%c0_15, %c0_16] : memref<1x128xf32, #tpu.memory_space<vmem>>, vector<1x128xf32>
      %18 = vector.broadcast %17 : vector<1x128xf32> to vector<8x128xf32>
      %19 = arith.addf %16, %18 : vector<8x128xf32>
      %c0_17 = arith.constant 0 : index
      %c0_18 = arith.constant 0 : index
      %20 = vector.load %arg7[%c0_17, %c0_18] : memref<8x128xf32, #tpu.memory_space<vmem>>, vector<8x128xf32>
      tpu.vector_store %arg7[%c0_17, %c0_18], %19 {strides = array<i32>} : memref<8x128xf32, #tpu.memory_space<vmem>>, vector<8x128xf32>,
    } else {
    }
    return
  }
  func.func @transform_0(%arg0: i32, %arg1: i32) -> (i32, i32) {
    %c0_i32 = arith.constant 0 : i32
    %c0_i32_0 = arith.constant 0 : i32
    return %c0_i32, %arg1 : i32, i32
  }
  func.func @transform_1(%arg0: i32, %arg1: i32) -> (i32, i32) {
    %c0_i32 = arith.constant 0 : i32
    return %arg0, %arg1 : i32, i32
  }
  func.func @transform_2(%arg0: i32, %arg1: i32) -> (i32, i32) {
    %c0_i32 = arith.constant 0 : i32
    return %arg0, %arg1 : i32, i32
  }
  func.func @transform_3(%arg0: i32, %arg1: i32) -> (i32, i32) {
    %c0_i32 = arith.constant 0 : i32
    return %arg0, %arg1 : i32, i32
  }
  func.func @transform_4(%arg0: i32, %arg1: i32) -> (i32, i32) {
    %c0_i32 = arith.constant 0 : i32
    %c0_i32_0 = arith.constant 0 : i32
    return %c0_i32, %arg0 : i32, i32
  }
  func.func @transform_5(%arg0: i32, %arg1: i32) -> (i32, i32) {
    %c0_i32 = arith.constant 0 : i32
    %c0_i32_0 = arith.constant 0 : i32
    return %c0_i32, %arg0 : i32, i32
  }
}

</mosaic_0001>

<llo_original>
// kernel: noisy_linear_forward.1
$region0: #{noisy_linear_forward.1}
  #allocation0 [shape = 'u32[]', space=smem, size = 0x4, offset = 0x4, fixed_abs, tag = 'smem constant byte address 0x4 - core index']
  #allocation1 [shape = 'u32[144,128]{1,0:T(1,128)}', space=vmem, size = 0x12000, scoped, tag = 'internal scratch']
  #allocation2 [shape = 'f32[8,128]{1,0:T(8,128)}', space=vmem, size = 0x1000, scoped, tag = 'scratch operand']
  %s0 = inlined_call_operand.hbm [shape: f32[8,256], index: 0, kind: input, shape index: {}]
  %s1 = inlined_call_operand.hbm [shape: f32[256,256], index: 1, kind: input, shape index: {}]
  %s2 = inlined_call_operand.hbm [shape: f32[256,256], index: 2, kind: input, shape index: {}]
  %s3 = inlined_call_operand.hbm [shape: f32[256,256], index: 3, kind: input, shape index: {}]
  %s4 = inlined_call_operand.vmem [shape: f32[1,256], index: 4, kind: input, shape index: {}]
  %s5 = inlined_call_operand.hbm [shape: f32[8,256], index: 5, kind: output, shape index: {}]
  %s6 = sld [smem:[#allocation0]]
  $region77: #{noisy_linear_forward.1} parent=0
    _
  %s8 = ssub.s32 1, %s6
  %s9 = scalar_select 0, %s8, %s6
  $region1: #{noisy_linear_forward.1} parent=0
    #allocation3 [shape = 'u8[8192]{0}', space=vmem, size = 0x2000, scoped, tag = 'input window, operand 0']
    #allocation4 [shape = 's32[2]{0}', space=sflag, size = 0x8, scoped, tag = 'scoped memory for noisy_linear_forward.1']
    #allocation5 [shape = 's32[2]{0}', space=sflag, size = 0x8, scoped, tag = 'scoped memory for noisy_linear_forward.1']
    #allocation6 [shape = 'u8[131072]{0}', space=vmem, size = 0x20000, scoped, tag = 'input window, operand 1']
    #allocation7 [shape = 's32[2]{0}', space=sflag, size = 0x8, scoped, tag = 'scoped memory for noisy_linear_forward.1']
    #allocation8 [shape = 'u8[131072]{0}', space=vmem, size = 0x20000, scoped, tag = 'input window, operand 2']
    #allocation9 [shape = 'u8[131072]{0}', space=vmem, size = 0x20000, scoped, tag = 'input window, operand 3']
    #allocation10 [shape = 's32[2]{0}', space=sflag, size = 0x8, scoped, tag = 'scoped memory for noisy_linear_forward.1']
    #allocation11 [shape = 'u8[8192]{0}', space=vmem, size = 0x2000, scoped, tag = 'output window, operand 0']
    %10 = vsyncpa [#allocation4], 0
    %s11 = scalar_lea.sflag [#allocation4], 1
    %12 = vsyncpa %s11, 0
    %13 = vsyncpa [#allocation7], 0
    %s14 = scalar_lea.sflag [#allocation7], 1
    %15 = vsyncpa %s14, 0
    %16 = vsyncpa [#allocation10], 0
    %s17 = scalar_lea.sflag [#allocation10], 1
    %18 = vsyncpa %s17, 0
    %19 = vsyncpa [#allocation5], 0
    %s20 = scalar_lea.sflag [#allocation5], 1
    %21 = vsyncpa %s20, 0
    loop: start=0, step=1, limit=6
    $region2: #{noisy_linear_forward.1} parent=1 // loop_pre_header
      _
    $region3: #{noisy_linear_forward.1} parent=1 // loop_header
      %s23 = sphi 0, %s27
      %p24 = scmp.ge.s32.totalorder %s23, 6
      %s30 = sphi 0, %s42
      %s31 = sphi 0, %s38
      %s32 = sphi 0, %s30
      %s33 = sphi 0, %s31
      %s34 = sphi 0, %s32
      %s35 = sphi 0, %s33
      %s45 = sphi 0, %s47
      %s48 = sphi 0, %s45
      %s49 = sphi 0, %s48
      %s65 = sphi 0, %s49
      %s73 = sphi 0, %s75
      %s76 = sphi 0, %s73
      %s77 = sphi 0, %s76
      %s93 = sphi 0, %s77
      %s101 = sphi 0, %s103
      %s104 = sphi 0, %s101
      %s105 = sphi 0, %s104
      %s121 = sphi 0, %s105
      %s129 = sphi 0, %s131
      %s132 = sphi 0, %s129
      %s133 = sphi 0, %s132
      %s149 = sphi 0, %s133
      %s155 = sphi 0, %s157
      %s158 = sphi 0, %s155
      %s159 = sphi 0, %s158
      %s175 = sphi 0, %s159
      %s181 = sphi 0, %s183
      %s184 = sphi 0, %s181
      %s185 = sphi 0, %s184
      %s201 = sphi 0, %s185
    $region4: #{noisy_linear_forward.1} parent=1 // loop_header_branch
      %26 = sbr.rel (%p24) target = $region8
    $region5: #{noisy_linear_forward.1} parent=1 // loop_body
      %s28 = ssub.s32 %s23, 1
      %s29 = ssub.s32 %s23, 2
      %s36 = sadd.s32 1, %s31
      %p37 = scmp.ge.s32.totalorder %s36, 2
      %s38 = scalar_select %p37, 0, %s36
      %s39 = sadd.s32 1, %s30
      %s40 = scalar_select %p37, %s39, %s30
      %p41 = scmp.ge.s32.totalorder %s40, 2
      %s42 = scalar_select %p41, 0, %s40
      %s43 = ssub.s32 %s31, %s38
      %p44 = scmp.eq.s32.totalorder %s43, 0
      %s46 = sadd.s32 %s45, 1
      %s47 = scalar_select %p44, %s45, %s46
      %p50 = pneg %p44
      %p51 = scmp.eq.s32.totalorder %s23, 3
      %p52 = por %p50, %p51
      %p53 = scmp.ne.s32.totalorder %s45, %s48
      %p54 = scmp.eq.s32.totalorder %s23, 0
      %p55 = por %p53, %p54
      %p56 = scmp.ne.s32.totalorder %s45, %s48
      %p57 = scmp.eq.s32.totalorder %s28, 3
      %p58 = por %p56, %p57
      %p59 = scmp.ne.s32.totalorder %s48, %s49
      %p60 = scmp.eq.s32.totalorder %s28, 0
      %p61 = por %p59, %p60
      %p62 = scmp.ne.s32.totalorder %s48, %s49
      %p63 = scmp.eq.s32.totalorder %s29, 3
      %p64 = por %p62, %p63
      %p66 = scmp.ne.s32.totalorder %s49, %s65
      %p67 = scmp.eq.s32.totalorder %s29, 0
      %p68 = por %p66, %p67
      %s69 = ssub.s32 %s30, %s42
      %s70 = ssub.s32 %s31, %s38
      %s71 = sor.u32 %s69, %s70
      %p72 = scmp.eq.s32.totalorder %s71, 0
      %s74 = sadd.s32 %s73, 1
      %s75 = scalar_select %p72, %s73, %s74
      %p78 = pneg %p72
      %p79 = scmp.eq.s32.totalorder %s23, 3
      %p80 = por %p78, %p79
      %p81 = scmp.ne.s32.totalorder %s73, %s76
      %p82 = scmp.eq.s32.totalorder %s23, 0
      %p83 = por %p81, %p82
      %p84 = scmp.ne.s32.totalorder %s73, %s76
      %p85 = scmp.eq.s32.totalorder %s28, 3
      %p86 = por %p84, %p85
      %p87 = scmp.ne.s32.totalorder %s76, %s77
      %p88 = scmp.eq.s32.totalorder %s28, 0
      %p89 = por %p87, %p88
      %p90 = scmp.ne.s32.totalorder %s76, %s77
      %p91 = scmp.eq.s32.totalorder %s29, 3
      %p92 = por %p90, %p91
      %p94 = scmp.ne.s32.totalorder %s77, %s93
      %p95 = scmp.eq.s32.totalorder %s29, 0
      %p96 = por %p94, %p95
      %s97 = ssub.s32 %s30, %s42
      %s98 = ssub.s32 %s31, %s38
      %s99 = sor.u32 %s97, %s98
      %p100 = scmp.eq.s32.totalorder %s99, 0
      %s102 = sadd.s32 %s101, 1
      %s103 = scalar_select %p100, %s101, %s102
      %p106 = pneg %p100
      %p107 = scmp.eq.s32.totalorder %s23, 3
      %p108 = por %p106, %p107
      %p109 = scmp.ne.s32.totalorder %s101, %s104
      %p110 = scmp.eq.s32.totalorder %s23, 0
      %p111 = por %p109, %p110
      %p112 = scmp.ne.s32.totalorder %s101, %s104
      %p113 = scmp.eq.s32.totalorder %s28, 3
      %p114 = por %p112, %p113
      %p115 = scmp.ne.s32.totalorder %s104, %s105
      %p116 = scmp.eq.s32.totalorder %s28, 0
      %p117 = por %p115, %p116
      %p118 = scmp.ne.s32.totalorder %s104, %s105
      %p119 = scmp.eq.s32.totalorder %s29, 3
      %p120 = por %p118, %p119
      %p122 = scmp.ne.s32.totalorder %s105, %s121
      %p123 = scmp.eq.s32.totalorder %s29, 0
      %p124 = por %p122, %p123
      %s125 = ssub.s32 %s30, %s42
      %s126 = ssub.s32 %s31, %s38
      %s127 = sor.u32 %s125, %s126
      %p128 = scmp.eq.s32.totalorder %s127, 0
      %s130 = sadd.s32 %s129, 1
      %s131 = scalar_select %p128, %s129, %s130
      %p134 = pneg %p128
      %p135 = scmp.eq.s32.totalorder %s23, 3
      %p136 = por %p134, %p135
      %p137 = scmp.ne.s32.totalorder %s129, %s132
      %p138 = scmp.eq.s32.totalorder %s23, 0
      %p139 = por %p137, %p138
      %p140 = scmp.ne.s32.totalorder %s129, %s132
      %p141 = scmp.eq.s32.totalorder %s28, 3
      %p142 = por %p140, %p141
      %p143 = scmp.ne.s32.totalorder %s132, %s133
      %p144 = scmp.eq.s32.totalorder %s28, 0
      %p145 = por %p143, %p144
      %p146 = scmp.ne.s32.totalorder %s132, %s133
      %p147 = scmp.eq.s32.totalorder %s29, 3
      %p148 = por %p146, %p147
      %p150 = scmp.ne.s32.totalorder %s133, %s149
      %p151 = scmp.eq.s32.totalorder %s29, 0
      %p152 = por %p150, %p151
      %s153 = ssub.s32 %s30, %s42
      %p154 = scmp.eq.s32.totalorder %s153, 0
      %s156 = sadd.s32 %s155, 1
      %s157 = scalar_select %p154, %s155, %s156
      %p160 = pneg %p154
      %p161 = scmp.eq.s32.totalorder %s23, 3
      %p162 = por %p160, %p161
      %p163 = scmp.ne.s32.totalorder %s155, %s158
      %p164 = scmp.eq.s32.totalorder %s23, 0
      %p165 = por %p163, %p164
      %p166 = scmp.ne.s32.totalorder %s155, %s158
      %p167 = scmp.eq.s32.totalorder %s28, 3
      %p168 = por %p166, %p167
      %p169 = scmp.ne.s32.totalorder %s158, %s159
      %p170 = scmp.eq.s32.totalorder %s28, 0
      %p171 = por %p169, %p170
      %p172 = scmp.ne.s32.totalorder %s158, %s159
      %p173 = scmp.eq.s32.totalorder %s29, 3
      %p174 = por %p172, %p173
      %p176 = scmp.ne.s32.totalorder %s159, %s175
      %p177 = scmp.eq.s32.totalorder %s29, 0
      %p178 = por %p176, %p177
      %s179 = ssub.s32 %s30, %s42
      %p180 = scmp.eq.s32.totalorder %s179, 0
      %s182 = sadd.s32 %s181, 1
      %s183 = scalar_select %p180, %s181, %s182
      %p186 = pneg %p180
      %p187 = scmp.eq.s32.totalorder %s23, 3
      %p188 = por %p186, %p187
      %p189 = scmp.ne.s32.totalorder %s181, %s184
      %p190 = scmp.eq.s32.totalorder %s23, 0
      %p191 = por %p189, %p190
      %p192 = scmp.ne.s32.totalorder %s181, %s184
      %p193 = scmp.eq.s32.totalorder %s28, 3
      %p194 = por %p192, %p193
      %p195 = scmp.ne.s32.totalorder %s184, %s185
      %p196 = scmp.eq.s32.totalorder %s28, 0
      %p197 = por %p195, %p196
      %p198 = scmp.ne.s32.totalorder %s184, %s185
      %p199 = scmp.eq.s32.totalorder %s29, 3
      %p200 = por %p198, %p199
      %p202 = scmp.ne.s32.totalorder %s185, %s201
      %p203 = scmp.eq.s32.totalorder %s29, 0
      %p204 = por %p202, %p203
      %p205 = scmp.le.s32.totalorder 1, %s23
      %p206 = scmp.lt.s32.totalorder %s23, 5
      %p207 = pnand %p205, %p206
      %p208 = pneg %p207
      // Predicated region
      $region9: #{noisy_linear_forward.1} parent=5 // pred_check
        _
      $region10: #{noisy_linear_forward.1} parent=5 // pred_check_branch
        %210 = sbr.rel (%p207) target = $region12
      $region11: #{noisy_linear_forward.1} parent=5 // pred_region
        %s211 = ssub.s32 %s23, 1
      $region12: #{noisy_linear_forward.1} parent=5 // pred_fallthru
        _
      %p212 = scmp.lt.s32.totalorder %s23, 4
      // Predicated region
      $region13: #{noisy_linear_forward.1} parent=5 // pred_check
        %p213 = pneg %p212
      $region14: #{noisy_linear_forward.1} parent=5 // pred_check_branch
        %215 = sbr.rel (%p213) target = $region16
      $region15: #{noisy_linear_forward.1} parent=5 // pred_region
        // Predicated region
        $region17: #{noisy_linear_forward.1} parent=15 // pred_check
          %p216 = pneg %p55
        $region18: #{noisy_linear_forward.1} parent=15 // pred_check_branch
          %218 = sbr.rel (%p216) target = $region20
        $region19: #{noisy_linear_forward.1} parent=15 // pred_region
          %s219 = sand.u32 %s45, 1
          %s220 = scalar_lea.sflag [#allocation4], %s219
          %s221 = sand.u32 %s45, 1
          %s222 = smul.addr %s221, 8
          %s223 = scalar_lea.vmem [#allocation3], %s222
          %s225 = ssub.s32 128, 128
          %226 = vsyncadd %s220, %s225
          %s227 = smul.addr %s31, 128
          %s228 = scalar_lea.hbm %s0, %s227
          %s230 = sshll.u32 %s223, 4
          %s231 = int_to_ptr.vmem [resolvable:$true] %s230
          %233 = dma.hbm_to_vmem [thread:$0]  %s228, 128, %s231, %s220
        $region20: #{noisy_linear_forward.1} parent=15 // pred_fallthru
          _
        // Predicated region
        $region21: #{noisy_linear_forward.1} parent=15 // pred_check
          %p234 = pneg %p83
        $region22: #{noisy_linear_forward.1} parent=15 // pred_check_branch
          %236 = sbr.rel (%p234) target = $region24
        $region23: #{noisy_linear_forward.1} parent=15 // pred_region
          %s237 = sand.u32 %s23, 1
          %s238 = scalar_lea.sflag [#allocation7], %s237
          %s239 = sand.u32 %s73, 1
          %s240 = smul.addr %s239, 128
          %s241 = scalar_lea.vmem [#allocation6], %s240
          %s242 = smul.u32 16, %s30
          %s244 = ssub.s32 2048, 2048
          %245 = vsyncadd %s238, %s244
          %s246 = smul.addr %s242, 2
          %s247 = sadd.s32 %s31, %s246
          %s248 = smul.addr %s247, 128
          %s249 = scalar_lea.hbm %s1, %s248
          %s250 = sshll.u32 %s241, 4
          %s251 = int_to_ptr.vmem [resolvable:$true] %s250
          %256 = dma.hbm_to_vmem [thread:$0]  %s249, 2048, %s251, %s238, 256, 128, 8
        $region24: #{noisy_linear_forward.1} parent=15 // pred_fallthru
          _
        // Predicated region
        $region25: #{noisy_linear_forward.1} parent=15 // pred_check
          %p257 = pneg %p111
        $region26: #{noisy_linear_forward.1} parent=15 // pred_check_branch
          %259 = sbr.rel (%p257) target = $region28
        $region27: #{noisy_linear_forward.1} parent=15 // pred_region
          %s260 = sand.u32 %s23, 1
          %s261 = scalar_lea.sflag [#allocation7], %s260
          %s262 = sand.u32 %s101, 1
          %s263 = smul.addr %s262, 128
          %s264 = scalar_lea.vmem [#allocation8], %s263
          %s265 = smul.u32 16, %s30
          %s267 = ssub.s32 2048, 2048
          %268 = vsyncadd %s261, %s267
          %s269 = smul.addr %s265, 2
          %s270 = sadd.s32 %s31, %s269
          %s271 = smul.addr %s270, 128
          %s272 = scalar_lea.hbm %s2, %s271
          %s273 = sshll.u32 %s264, 4
          %s274 = int_to_ptr.vmem [resolvable:$true] %s273
          %279 = dma.hbm_to_vmem [thread:$0]  %s272, 2048, %s274, %s261, 256, 128, 8
        $region28: #{noisy_linear_forward.1} parent=15 // pred_fallthru
          _
        // Predicated region
        $region29: #{noisy_linear_forward.1} parent=15 // pred_check
          %p280 = pneg %p139
        $region30: #{noisy_linear_forward.1} parent=15 // pred_check_branch
          %282 = sbr.rel (%p280) target = $region32
        $region31: #{noisy_linear_forward.1} parent=15 // pred_region
          %s283 = sand.u32 %s129, 1
          %s284 = scalar_lea.sflag [#allocation10], %s283
          %s285 = sand.u32 %s129, 1
          %s286 = smul.addr %s285, 128
          %s287 = scalar_lea.vmem [#allocation9], %s286
          %s288 = smul.u32 16, %s30
          %s290 = ssub.s32 2048, 2048
          %291 = vsyncadd %s284, %s290
          %s292 = smul.addr %s288, 2
          %s293 = sadd.s32 %s31, %s292
          %s294 = smul.addr %s293, 128
          %s295 = scalar_lea.hbm %s3, %s294
          %s296 = sshll.u32 %s287, 4
          %s297 = int_to_ptr.vmem [resolvable:$true] %s296
          %302 = dma.hbm_to_vmem [thread:$0]  %s295, 2048, %s297, %s284, 256, 128, 8
        $region32: #{noisy_linear_forward.1} parent=15 // pred_fallthru
          _
        // Predicated region
        $region33: #{noisy_linear_forward.1} parent=15 // pred_check
          %p303 = pneg %p165
        $region34: #{noisy_linear_forward.1} parent=15 // pred_check_branch
          %305 = sbr.rel (%p303) target = $region36
        $region35: #{noisy_linear_forward.1} parent=15 // pred_region
          %p306 = scmp.lt.s32.totalorder %s30, 1
          %s307 = scalar_select %p306, %s30, 1
          %s308 = scalar_lea.vmem %s4, %s307
        $region36: #{noisy_linear_forward.1} parent=15 // pred_fallthru
          _
      $region16: #{noisy_linear_forward.1} parent=5 // pred_fallthru
        _
      %p309 = scmp.le.s32.totalorder 1, %s23
      %p310 = scmp.lt.s32.totalorder %s23, 5
      %p311 = pnand %p309, %p310
      %p312 = pneg %p311
      // Predicated region
      $region37: #{noisy_linear_forward.1} parent=5 // pred_check
        _
      $region38: #{noisy_linear_forward.1} parent=5 // pred_check_branch
        %314 = sbr.rel (%p311) target = $region40
      $region39: #{noisy_linear_forward.1} parent=5 // pred_region
        %s315 = ssub.s32 %s23, 1
        %s316 = sand.u32 %s48, 1
        %s317 = scalar_lea.sflag [#allocation4], %s316
        %s318 = sand.u32 %s48, 1
        %s319 = smul.addr %s318, 8
        %s320 = scalar_lea.vmem [#allocation3], %s319
        // Predicated region
        $region41: #{noisy_linear_forward.1} parent=39 // pred_check
          %p321 = pneg %p61
        $region42: #{noisy_linear_forward.1} parent=39 // pred_check_branch
          %323 = sbr.rel (%p321) target = $region44
        $region43: #{noisy_linear_forward.1} parent=39 // pred_region
          %324 = dma.done %s317, 128
        $region44: #{noisy_linear_forward.1} parent=39 // pred_fallthru
          _
        %s325 = sand.u32 %s28, 1
        %s326 = scalar_lea.sflag [#allocation7], %s325
        %s327 = sand.u32 %s76, 1
        %s328 = smul.addr %s327, 128
        %s329 = scalar_lea.vmem [#allocation6], %s328
        // Predicated region
        $region45: #{noisy_linear_forward.1} parent=39 // pred_check
          %p330 = pneg %p89
        $region46: #{noisy_linear_forward.1} parent=39 // pred_check_branch
          %332 = sbr.rel (%p330) target = $region48
        $region47: #{noisy_linear_forward.1} parent=39 // pred_region
          %333 = dma.done %s326, 2048
        $region48: #{noisy_linear_forward.1} parent=39 // pred_fallthru
          _
        %s334 = sand.u32 %s28, 1
        %s335 = scalar_lea.sflag [#allocation7], %s334
        %s336 = sand.u32 %s104, 1
        %s337 = smul.addr %s336, 128
        %s338 = scalar_lea.vmem [#allocation8], %s337
        // Predicated region
        $region49: #{noisy_linear_forward.1} parent=39 // pred_check
          %p339 = pneg %p117
        $region50: #{noisy_linear_forward.1} parent=39 // pred_check_branch
          %341 = sbr.rel (%p339) target = $region52
        $region51: #{noisy_linear_forward.1} parent=39 // pred_region
          %342 = dma.done %s335, 2048
        $region52: #{noisy_linear_forward.1} parent=39 // pred_fallthru
          _
        %s343 = sand.u32 %s132, 1
        %s344 = scalar_lea.sflag [#allocation10], %s343
        %s345 = sand.u32 %s132, 1
        %s346 = smul.addr %s345, 128
        %s347 = scalar_lea.vmem [#allocation9], %s346
        // Predicated region
        $region53: #{noisy_linear_forward.1} parent=39 // pred_check
          %p348 = pneg %p145
        $region54: #{noisy_linear_forward.1} parent=39 // pred_check_branch
          %350 = sbr.rel (%p348) target = $region56
        $region55: #{noisy_linear_forward.1} parent=39 // pred_region
          %351 = dma.done %s344, 2048
        $region56: #{noisy_linear_forward.1} parent=39 // pred_fallthru
          _
        %s352 = sand.u32 %s48, 1
        %s353 = scalar_lea.sflag [#allocation4], %s352
        %s354 = sand.u32 %s48, 1
        %s355 = smul.addr %s354, 8
        %s356 = scalar_lea.vmem [#allocation3], %s355
        %p357 = pneg %p61
        %p358 = pneg %p58
        %s359 = sand.u32 %s28, 1
        %s360 = scalar_lea.sflag [#allocation7], %s359
        %s361 = sand.u32 %s76, 1
        %s362 = smul.addr %s361, 128
        %s363 = scalar_lea.vmem [#allocation6], %s362
        %p364 = pneg %p89
        %p365 = pneg %p86
        %s366 = sand.u32 %s28, 1
        %s367 = scalar_lea.sflag [#allocation7], %s366
        %s368 = sand.u32 %s104, 1
        %s369 = smul.addr %s368, 128
        %s370 = scalar_lea.vmem [#allocation8], %s369
        %p371 = pneg %p117
        %p372 = pneg %p114
        %s373 = sand.u32 %s132, 1
        %s374 = scalar_lea.sflag [#allocation10], %s373
        %s375 = sand.u32 %s132, 1
        %s376 = smul.addr %s375, 128
        %s377 = scalar_lea.vmem [#allocation9], %s376
        %p378 = pneg %p145
        %p379 = pneg %p142
        %p380 = scmp.lt.s32.totalorder %s32, 1
        %s381 = scalar_select %p380, %s32, 1
        %s382 = scalar_lea.vmem %s4, %s381
        %p383 = pneg %p171
        %p384 = pneg %p168
        %p385 = pneg %p197
        %p386 = pneg %p194
        %s387 = sand.u32 %s184, 1
        %s388 = scalar_lea.sflag [#allocation5], %s387
        %s389 = sand.u32 %s184, 1
        %s390 = smul.addr %s389, 8
        %s391 = scalar_lea.vmem [#allocation11], %s390
        %s392 = smul.u32 16, %s32
        %s393 = smul.u32 16, %s32
        %s394 = smul.u32 16, %s32
        %p395 = scmp.lt.s32.totalorder %s32, 1
        %s396 = scalar_select %p395, %s32, 1
        %s397 = scalar_lea.vmem %s4, %s396
        %p398 = scmp.eq.s32.totalorder %s33, 0
        // Predicated region
        $region57: #{noisy_linear_forward.1} parent=39 // pred_check
          %p399 = pneg %p398
        $region58: #{noisy_linear_forward.1} parent=39 // pred_check_branch
          %401 = sbr.rel (%p399) target = $region60
        $region59: #{noisy_linear_forward.1} parent=39 // pred_region
          %402 = vst [vmem:[#allocation2] sm:$0xff] 0.0
        $region60: #{noisy_linear_forward.1} parent=39 // pred_fallthru
          _
        %v403 = vld [vmem:[%s329] sm:$0xff]
        %v404 = vld [vmem:[%s329 + $0x8] sm:$0xff]
        %v405 = vld [vmem:[%s329 + $0x10] sm:$0xff]
        %v406 = vld [vmem:[%s329 + $0x18] sm:$0xff]
        %v407 = vld [vmem:[%s329 + $0x20] sm:$0xff]
        %v408 = vld [vmem:[%s329 + $0x28] sm:$0xff]
        %v409 = vld [vmem:[%s329 + $0x30] sm:$0xff]
        %v410 = vld [vmem:[%s329 + $0x38] sm:$0xff]
        %v411 = vld [vmem:[%s329 + $0x40] sm:$0xff]
        %v412 = vld [vmem:[%s329 + $0x48] sm:$0xff]
        %v413 = vld [vmem:[%s329 + $0x50] sm:$0xff]
        %v414 = vld [vmem:[%s329 + $0x58] sm:$0xff]
        %v415 = vld [vmem:[%s329 + $0x60] sm:$0xff]
        %v416 = vld [vmem:[%s329 + $0x68] sm:$0xff]
        %v417 = vld [vmem:[%s329 + $0x70] sm:$0xff]
        %v418 = vld [vmem:[%s329 + $0x78] sm:$0xff]
        %v419 = vld [vmem:[%s338] sm:$0xff]
        %v420 = vld [vmem:[%s338 + $0x8] sm:$0xff]
        %v421 = vld [vmem:[%s338 + $0x10] sm:$0xff]
        %v422 = vld [vmem:[%s338 + $0x18] sm:$0xff]
        %v423 = vld [vmem:[%s338 + $0x20] sm:$0xff]
        %v424 = vld [vmem:[%s338 + $0x28] sm:$0xff]
        %v425 = vld [vmem:[%s338 + $0x30] sm:$0xff]
        %v426 = vld [vmem:[%s338 + $0x38] sm:$0xff]
        %v427 = vld [vmem:[%s338 + $0x40] sm:$0xff]
        %v428 = vld [vmem:[%s338 + $0x48] sm:$0xff]
        %v429 = vld [vmem:[%s338 + $0x50] sm:$0xff]
        %v430 = vld [vmem:[%s338 + $0x58] sm:$0xff]
        %v431 = vld [vmem:[%s338 + $0x60] sm:$0xff]
        %v432 = vld [vmem:[%s338 + $0x68] sm:$0xff]
        %v433 = vld [vmem:[%s338 + $0x70] sm:$0xff]
        %v434 = vld [vmem:[%s338 + $0x78] sm:$0xff]
        %v435 = vld [vmem:[%s347] sm:$0xff]
        %v436 = vld [vmem:[%s347 + $0x8] sm:$0xff]
        %v437 = vld [vmem:[%s347 + $0x10] sm:$0xff]
        %v438 = vld [vmem:[%s347 + $0x18] sm:$0xff]
        %v439 = vld [vmem:[%s347 + $0x20] sm:$0xff]
        %v440 = vld [vmem:[%s347 + $0x28] sm:$0xff]
        %v441 = vld [vmem:[%s347 + $0x30] sm:$0xff]
        %v442 = vld [vmem:[%s347 + $0x38] sm:$0xff]
        %v443 = vld [vmem:[%s347 + $0x40] sm:$0xff]
        %v444 = vld [vmem:[%s347 + $0x48] sm:$0xff]
        %v445 = vld [vmem:[%s347 + $0x50] sm:$0xff]
        %v446 = vld [vmem:[%s347 + $0x58] sm:$0xff]
        %v447 = vld [vmem:[%s347 + $0x60] sm:$0xff]
        %v448 = vld [vmem:[%s347 + $0x68] sm:$0xff]
        %v449 = vld [vmem:[%s347 + $0x70] sm:$0xff]
        %v450 = vld [vmem:[%s347 + $0x78] sm:$0xff]
        %v451 = vmul.f32 %v419, %v435
        %v452 = vmul.f32 %v420, %v436
        %v453 = vmul.f32 %v421, %v437
        %v454 = vmul.f32 %v422, %v438
        %v455 = vmul.f32 %v423, %v439
        %v456 = vmul.f32 %v424, %v440
        %v457 = vmul.f32 %v425, %v441
        %v458 = vmul.f32 %v426, %v442
        %v459 = vmul.f32 %v427, %v443
        %v460 = vmul.f32 %v428, %v444
        %v461 = vmul.f32 %v429, %v445
        %v462 = vmul.f32 %v430, %v446
        %v463 = vmul.f32 %v431, %v447
        %v464 = vmul.f32 %v432, %v448
        %v465 = vmul.f32 %v433, %v449
        %v466 = vmul.f32 %v434, %v450
        %v467 = vadd.f32 %v403, %v451
        %v468 = vadd.f32 %v404, %v452
        %v469 = vadd.f32 %v405, %v453
        %v470 = vadd.f32 %v406, %v454
        %v471 = vadd.f32 %v407, %v455
        %v472 = vadd.f32 %v408, %v456
        %v473 = vadd.f32 %v409, %v457
        %v474 = vadd.f32 %v410, %v458
        %v475 = vadd.f32 %v411, %v459
        %v476 = vadd.f32 %v412, %v460
        %v477 = vadd.f32 %v413, %v461
        %v478 = vadd.f32 %v414, %v462
        %v479 = vadd.f32 %v415, %v463
        %v480 = vadd.f32 %v416, %v464
        %v481 = vadd.f32 %v417, %v465
        %v482 = vadd.f32 %v418, %v466
        %v483 = vld [vmem:[#allocation2] sm:$0xff]
        %v484 = vld [vmem:[%s320] sm:$0xff]
        %485 = vmatprep.subr.mxu0 0.0
        %486 = vmatpush1.xpose.msra.mxu0 %v467
        %487 = vmatprep.subr.mxu0 0.0
        %488 = vmatpush1.xpose.msra.mxu0 %v468
        %489 = vmatprep.subr.mxu0 0.0
        %490 = vmatpush1.xpose.msra.mxu0 %v469
        %491 = vmatprep.subr.mxu0 0.0
        %492 = vmatpush1.xpose.msra.mxu0 %v470
        %493 = vmatprep.subr.mxu0 0.0
        %494 = vmatpush1.xpose.msra.mxu0 %v471
        %495 = vmatprep.subr.mxu0 0.0
        %496 = vmatpush1.xpose.msra.mxu0 %v472
        %497 = vmatprep.subr.mxu0 0.0
        %498 = vmatpush1.xpose.msra.mxu0 %v473
        %499 = vmatprep.subr.mxu0 0.0
        %500 = vmatpush1.xpose.msra.mxu0 %v474
        %501 = vmatprep.subr.mxu0 0.0
        %502 = vmatpush1.xpose.msra.mxu0 %v475
        %503 = vmatprep.subr.mxu0 0.0
        %504 = vmatpush1.xpose.msra.mxu0 %v476
        %505 = vmatprep.subr.mxu0 0.0
        %506 = vmatpush1.xpose.msra.mxu0 %v477
        %507 = vmatprep.subr.mxu0 0.0
        %508 = vmatpush1.xpose.msra.mxu0 %v478
        %509 = vmatprep.subr.mxu0 0.0
        %510 = vmatpush1.xpose.msra.mxu0 %v479
        %511 = vmatprep.subr.mxu0 0.0
        %512 = vmatpush1.xpose.msra.mxu0 %v480
        %513 = vmatprep.subr.mxu0 0.0
        %514 = vmatpush1.xpose.msra.mxu0 %v481
        %515 = vmatprep.subr.mxu0 0.0
        %516 = vmatpush1.xpose.msra.mxu0 %v482
        %517 = vmatprep.subr.mxu0 0.0
        %518 = vmatpush1.xpose.msra.mxu0 0.0
        %519 = vmatprep.subr.mxu0 0.0
        %520 = vmatpush1.xpose.msra.mxu0 0.0
        %521 = vmatprep.subr.mxu0 0.0
        %522 = vmatpush1.xpose.msra.mxu0 0.0
        %523 = vmatprep.subr.mxu0 0.0
        %524 = vmatpush1.xpose.msra.mxu0 0.0
        %525 = vmatprep.subr.mxu0 0.0
        %526 = vmatpush1.xpose.msra.mxu0 0.0
        %527 = vmatprep.subr.mxu0 0.0
        %528 = vmatpush1.xpose.msra.mxu0 0.0
        %529 = vmatprep.subr.mxu0 0.0
        %530 = vmatpush1.xpose.msra.mxu0 0.0
        %531 = vmatprep.subr.mxu0 0.0
        %532 = vmatpush1.xpose.msra.mxu0 0.0
        %533 = vmatprep.subr.mxu0 0.0
        %534 = vmatpush1.xpose.msra.mxu0 0.0
        %535 = vmatprep.subr.mxu0 0.0
        %536 = vmatpush1.xpose.msra.mxu0 0.0
        %537 = vmatprep.subr.mxu0 0.0
        %538 = vmatpush1.xpose.msra.mxu0 0.0
        %539 = vmatprep.subr.mxu0 0.0
        %540 = vmatpush1.xpose.msra.mxu0 0.0
        %541 = vmatprep.subr.mxu0 0.0
        %542 = vmatpush1.xpose.msra.mxu0 0.0
        %543 = vmatprep.subr.mxu0 0.0
        %544 = vmatpush1.xpose.msra.mxu0 0.0
        %545 = vmatprep.subr.mxu0 0.0
        %546 = vmatpush1.xpose.msra.mxu0 0.0
        %547 = vmatprep.subr.mxu0 0.0
        %548 = vmatpush1.xpose.msra.mxu0 0.0
        %549 = vmatprep.mubr.f32.mxu0 0.0
        %550 = vmatmul.mubr.f32.gmra.mrb[0].mxu0 %v484
        %v551 = vpop.f32.mrb[0].mxu0
        %v552 = vadd.f32 0.0, %v551
        %v553 = vpop.f32.mrb[0].mxu0
        %554 = vdwg.mxu0
        %v555 = vadd.f32 %v483, %v552
        %556 = vst [vmem:[#allocation2] sm:$0xff] %v555
        %p557 = scmp.eq.s32.totalorder %s33, 1
        // Predicated region
        $region61: #{noisy_linear_forward.1} parent=39 // pred_check
          %p558 = pneg %p557
        $region62: #{noisy_linear_forward.1} parent=39 // pred_check_branch
          %560 = sbr.rel (%p558) target = $region64
        $region63: #{noisy_linear_forward.1} parent=39 // pred_region
          %v561 = vld [vmem:[#allocation2] sm:$0xff]
          %v562 = vld [vmem:[%s397] sm:$0x1]
          %v564 = vlaneseq
          %v565 = vshrl.u32 %v564, 7
          %v566 = vsub.s32 0, %v565
          %v567 = vrot.slane %v562, %v566
          %v569 = vadd.f32 %v561, %v567
          %570 = vst [vmem:[%s391] sm:$0xff] %v569
        $region64: #{noisy_linear_forward.1} parent=39 // pred_fallthru
          _
        %s571 = sand.u32 %s184, 1
        %s572 = scalar_lea.sflag [#allocation5], %s571
        %s573 = sand.u32 %s184, 1
        %s574 = smul.addr %s573, 8
        %s575 = scalar_lea.vmem [#allocation11], %s574
        // Predicated region
        $region65: #{noisy_linear_forward.1} parent=39 // pred_check
          %p576 = pneg %p194
        $region66: #{noisy_linear_forward.1} parent=39 // pred_check_branch
          %578 = sbr.rel (%p576) target = $region68
        $region67: #{noisy_linear_forward.1} parent=39 // pred_region
          %s580 = ssub.s32 128, 128
          %581 = vsyncadd %s572, %s580
          %s582 = smul.addr %s32, 128
          %s583 = scalar_lea.hbm %s5, %s582
          %s585 = sshll.u32 %s575, 4
          %s586 = int_to_ptr.vmem [resolvable:$true] %s585
          %588 = dma.vmem_to_hbm [thread:$0]  %s586, 128, %s583, %s572
        $region68: #{noisy_linear_forward.1} parent=39 // pred_fallthru
          _
      $region40: #{noisy_linear_forward.1} parent=5 // pred_fallthru
        _
      %p589 = scmp.le.s32.totalorder 2, %s23
      // Predicated region
      $region69: #{noisy_linear_forward.1} parent=5 // pred_check
        %p590 = pneg %p589
      $region70: #{noisy_linear_forward.1} parent=5 // pred_check_branch
        %592 = sbr.rel (%p590) target = $region72
      $region71: #{noisy_linear_forward.1} parent=5 // pred_region
        %s593 = ssub.s32 %s23, 2
        // Predicated region
        $region73: #{noisy_linear_forward.1} parent=71 // pred_check
          %p594 = pneg %p200
        $region74: #{noisy_linear_forward.1} parent=71 // pred_check_branch
          %596 = sbr.rel (%p594) target = $region76
        $region75: #{noisy_linear_forward.1} parent=71 // pred_region
          %s597 = sand.u32 %s185, 1
          %s598 = scalar_lea.sflag [#allocation5], %s597
          %s599 = sand.u32 %s185, 1
          %s600 = smul.addr %s599, 8
          %s601 = scalar_lea.vmem [#allocation11], %s600
          %602 = dma.done %s598, 128
        $region76: #{noisy_linear_forward.1} parent=71 // pred_fallthru
          _
      $region72: #{noisy_linear_forward.1} parent=5 // pred_fallthru
        _
    $region6: #{noisy_linear_forward.1} parent=1 // loop_footer
      %s27 = sadd.s32 1, %s23
    $region7: #{noisy_linear_forward.1} parent=1 // loop_footer_branch
      %22 = sbr.rel target = $region3
    $region8: #{noisy_linear_forward.1} parent=1 // loop_exit
      _
    %603 = vsyncpa [#allocation4], 1
    %s604 = scalar_lea.sflag [#allocation4], 1
    %605 = vsyncpa %s604, 1
    %606 = vsyncpa [#allocation7], 1
    %s607 = scalar_lea.sflag [#allocation7], 1
    %608 = vsyncpa %s607, 1
    %609 = vsyncpa [#allocation10], 1
    %s610 = scalar_lea.sflag [#allocation10], 1
    %611 = vsyncpa %s610, 1
    %612 = vsyncpa [#allocation5], 1
    %s613 = scalar_lea.sflag [#allocation5], 1
    %614 = vsyncpa %s613, 1

</llo_original>
